<compile_context>
chip_gen: v6e
topology: v6e:2x2x1
jax: 0.10.0
libtpu: 0.0.40
codegen_flags: <defaults>
</compile_context>

<pallas_src>
import functools

import jax
import jax.numpy as jnp
from jax.experimental import pallas as pl
from jax.experimental.pallas import tpu as pltpu

SUBLANE = 8


def _round_up(n, m):
    return (n + m - 1) // m * m


def dqn_kernel(x_ref, w1_ref, w234_ref, w5_ref, b_ref, out_ref):
    x = x_ref[...]  # f32 (Bp, F)

    # F.normalize(x, dim=0): divide each feature column by its L2 norm over
    # the batch. rsqrt + multiply (one EUP op + one VPU mul) instead of
    # sqrt + divide; clamp matches torch's eps=1e-12 on the norm.
    sumsq = jnp.sum(x * x, axis=0, keepdims=True)
    x = x * jax.lax.rsqrt(jnp.maximum(sumsq, 1e-24))

    n_actions = out_ref.shape[1]

    def linear(h, w, b):
        # bf16 MXU operands, f32 accumulation; bias add / ReLU stay f32.
        return jnp.dot(h.astype(jnp.bfloat16), w,
                       preferred_element_type=jnp.float32) + b

    h = jnp.maximum(linear(x, w1_ref[...], b_ref[0:1, :]), 0.0)   # layer1+relu
    # dropout (eval) -> identity
    h = jnp.maximum(linear(h, w234_ref[0], b_ref[1:2, :]), 0.0)   # layer2+relu
    h = jnp.maximum(linear(h, w234_ref[1], b_ref[2:3, :]), 0.0)   # layer3+relu
    h = jnp.maximum(linear(h, w234_ref[2], b_ref[3:4, :]), 0.0)   # layer4+relu
    out = linear(h, w5_ref[...], b_ref[4:5, :n_actions])          # layer5

    out_ref[...] = out.astype(out_ref.dtype)


def prepare_params(params):
    """One-time weight prep (hoisted out of the forward path).

    params: dict with w1..w5 as (in, out) f32 and b1..b5 as (1, out) f32.
    Returns a tuple of device arrays consumed directly by dqn_forward:
      w1   : (feat, hidden)   bf16
      w234 : (3, hidden, hidden) bf16   (stacked layer2/3/4 weights)
      w5   : (hidden, n_actions) bf16
      bias : (5, hidden) f32   (rows = b1..b5; b5 zero-padded to hidden lanes)
    """
    hidden = params["w1"].shape[1]
    n_actions = params["w5"].shape[1]
    assert n_actions <= hidden, "bias packing assumes n_actions <= hidden"

    w1 = params["w1"].astype(jnp.bfloat16)
    w234 = jnp.stack([params["w2"], params["w3"], params["w4"]]
                     ).astype(jnp.bfloat16)
    w5 = params["w5"].astype(jnp.bfloat16)

    b5_padded = jnp.pad(params["b5"], ((0, 0), (0, hidden - n_actions)))
    bias = jnp.concatenate(
        [params["b1"], params["b2"], params["b3"], params["b4"], b5_padded],
        axis=0).astype(jnp.float32)

    return (jax.device_put(w1), jax.device_put(w234),
            jax.device_put(w5), jax.device_put(bias))


@functools.partial(jax.jit, static_argnames=())
def dqn_forward(x, w1, w234, w5, bias):
    """Forward pass. Weights must come from prepare_params (bf16 / packed)."""
    B, feat = x.shape
    hidden = w1.shape[1]
    n_actions = w5.shape[1]

    # Pad batch to a sublane multiple. Zero rows contribute nothing to the
    # per-column sum of squares, so the normalization (and hence the outputs
    # of the real rows) is unchanged.
    Bp = max(_round_up(B, SUBLANE), SUBLANE)
    if Bp != B:
        x = jnp.pad(x, ((0, Bp - B), (0, 0)))
    x = x.astype(jnp.float32)

    flops = 2 * Bp * (feat * hidden + 3 * hidden * hidden + hidden * n_actions)
    bytes_accessed = (
        Bp * feat * 4 + Bp * n_actions * 4                               # x, out
        + 2 * (feat * hidden + 3 * hidden * hidden + hidden * n_actions)  # bf16 W
        + 4 * 5 * hidden)                                                 # f32 b

    vmem = pl.BlockSpec(memory_space=pltpu.MemorySpace.VMEM)
    out = pl.pallas_call(
        dqn_kernel,
        out_shape=jax.ShapeDtypeStruct((Bp, n_actions), jnp.float32),
        in_specs=[vmem] * 5,
        out_specs=vmem,
        cost_estimate=pl.CostEstimate(
            flops=flops, transcendentals=feat, bytes_accessed=bytes_accessed),
    )(x, w1, w234, w5, bias)
    return out[:B, :]


def init_params(key, n_observations, n_actions, hidden=256):
    dims = [(n_observations, hidden),
            (hidden, hidden),
            (hidden, hidden),
            (hidden, hidden),
            (hidden, n_actions)]
    params = {}
    for i, (din, dout) in enumerate(dims, start=1):
        key, kw, kb = jax.random.split(key, 3)
        # Kaiming-uniform-ish deterministic init (nn.Linear default scale).
        bound = 1.0 / jnp.sqrt(jnp.float32(din))
        params[f"w{i}"] = jax.random.uniform(
            kw, (din, dout), jnp.float32, -bound, bound)
        params[f"b{i}"] = jax.random.uniform(
            kb, (1, dout), jnp.float32, -bound, bound)
    return params


def dqn_reference(x, params):
    """Plain-JAX f32 reference mirroring the PyTorch forward (eval mode)."""
    col_norm = jnp.sqrt(jnp.sum(x * x, axis=0, keepdims=True))
    h = x / jnp.maximum(col_norm, 1e-12)
    h = jnp.maximum(h @ params["w1"] + params["b1"], 0.0)
    h = jnp.maximum(h @ params["w2"] + params["b2"], 0.0)
    h = jnp.maximum(h @ params["w3"] + params["b3"], 0.0)
    h = jnp.maximum(h @ params["w4"] + params["b4"], 0.0)
    return h @ params["w5"] + params["b5"]


if __name__ == "__main__":
    key = jax.random.PRNGKey(0)
    key, kx, kp = jax.random.split(key, 3)

    batch = 8
    n_observations = 32
    n_actions = 8

    x = jax.random.normal(kx, (batch, n_observations), jnp.float32)
    params = init_params(kp, n_observations, n_actions)

    # One-time weight preprocessing (bf16 cast, stacking, bias packing).
    w1, w234, w5, bias = prepare_params(params)

    out = dqn_forward(x, w1, w234, w5, bias)
    out = jax.block_until_ready(out)

    ref = dqn_reference(x, params)
    assert out.shape == (batch, n_actions)
    # Kernel uses bf16 MXU operands; compare against the f32 reference at a
    # bf16-appropriate tolerance.
    assert jnp.allclose(out, ref, atol=2e-2, rtol=2e-2), (
        float(jnp.max(jnp.abs(out - ref))))

    print("KERNEL_OK")
</pallas_src>

<mosaic_0001>
module attributes {stable_mosaic.version = 11 : i64} {
  func.func @dqn_kernel(%arg0: memref<8x32xf32, #tpu.memory_space<vmem>>, %arg1: memref<32x256xbf16, #tpu.memory_space<vmem>>, %arg2: memref<3x256x256xbf16, #tpu.memory_space<vmem>>, %arg3: memref<256x8xbf16, #tpu.memory_space<vmem>>, %arg4: memref<5x256xf32, #tpu.memory_space<vmem>>, %arg5: memref<8x8xf32, #tpu.memory_space<vmem>>) attributes {dimension_semantics = [], scalar_prefetch = 0 : i64, scratch_operands = 0 : i64, tpu.core_type = #tpu.core_type<tc>} {
    %c0 = arith.constant 0 : index
    %c0_0 = arith.constant 0 : index
    %0 = vector.load %arg0[%c0, %c0_0] : memref<8x32xf32, #tpu.memory_space<vmem>>, vector<8x32xf32>
    %1 = arith.mulf %0, %0 : vector<8x32xf32>
    %cst = arith.constant dense<0.000000e+00> : vector<32xf32>
    %2 = vector.multi_reduction <add>, %1, %cst [0] : vector<8x32xf32> to vector<32xf32>
    %3 = vector.shape_cast %2 : vector<32xf32> to vector<1x32xf32>
    %cst_1 = arith.constant 1.000000e-24 : f32
    %4 = vector.broadcast %cst_1 : f32 to vector<1x32xf32>
    %5 = arith.maximumf %3, %4 : vector<1x32xf32>
    %6 = math.rsqrt %5 : vector<1x32xf32>
    %7 = vector.broadcast %6 : vector<1x32xf32> to vector<8x32xf32>
    %8 = arith.mulf %0, %7 : vector<8x32xf32>
    %c0_2 = arith.constant 0 : index
    %c0_3 = arith.constant 0 : index
    %9 = vector.load %arg1[%c0_2, %c0_3] : memref<32x256xbf16, #tpu.memory_space<vmem>>, vector<32x256xbf16>
    %c0_4 = arith.constant 0 : index
    %c0_5 = arith.constant 0 : index
    %10 = vector.load %arg4[%c0_4, %c0_5] : memref<5x256xf32, #tpu.memory_space<vmem>>, vector<1x256xf32>
    %11 = arith.truncf %8 : vector<8x32xf32> to vector<8x32xbf16>
    %cst_6 = arith.constant dense<0.000000e+00> : vector<8x256xf32>
    %12 = tpu.matmul %11, %9, %cst_6 {dimension_numbers = #tpu.dot_dimension_numbers<[1], [0], [0], [1], [0, 0, 1, 1], [], []>} : vector<8x32xbf16>, vector<32x256xbf16>, vector<8x256xf32> -> vector<8x256xf32>
    %13 = vector.broadcast %10 : vector<1x256xf32> to vector<8x256xf32>
    %14 = arith.addf %12, %13 : vector<8x256xf32>
    %cst_7 = arith.constant 0.000000e+00 : f32
    %15 = vector.broadcast %cst_7 : f32 to vector<8x256xf32>
    %16 = arith.maximumf %14, %15 : vector<8x256xf32>
    %c0_8 = arith.constant 0 : index
    %c0_9 = arith.constant 0 : index
    %c0_10 = arith.constant 0 : index
    %17 = vector.load %arg2[%c0_8, %c0_9, %c0_10] : memref<3x256x256xbf16, #tpu.memory_space<vmem>>, vector<1x256x256xbf16>
    %18 = vector.shape_cast %17 : vector<1x256x256xbf16> to vector<256x256xbf16>
    %c1 = arith.constant 1 : index
    %c0_11 = arith.constant 0 : index
    %19 = vector.load %arg4[%c1, %c0_11] : memref<5x256xf32, #tpu.memory_space<vmem>>, vector<1x256xf32>
    %20 = arith.truncf %16 : vector<8x256xf32> to vector<8x256xbf16>
    %cst_12 = arith.constant dense<0.000000e+00> : vector<8x256xf32>
    %21 = tpu.matmul %20, %18, %cst_12 {dimension_numbers = #tpu.dot_dimension_numbers<[1], [0], [0], [1], [0, 0, 1, 1], [], []>} : vector<8x256xbf16>, vector<256x256xbf16>, vector<8x256xf32> -> vector<8x256xf32>
    %22 = vector.broadcast %19 : vector<1x256xf32> to vector<8x256xf32>
    %23 = arith.addf %21, %22 : vector<8x256xf32>
    %cst_13 = arith.constant 0.000000e+00 : f32
    %24 = vector.broadcast %cst_13 : f32 to vector<8x256xf32>
    %25 = arith.maximumf %23, %24 : vector<8x256xf32>
    %c1_14 = arith.constant 1 : index
    %c0_15 = arith.constant 0 : index
    %c0_16 = arith.constant 0 : index
    %26 = vector.load %arg2[%c1_14, %c0_15, %c0_16] : memref<3x256x256xbf16, #tpu.memory_space<vmem>>, vector<1x256x256xbf16>
    %27 = vector.shape_cast %26 : vector<1x256x256xbf16> to vector<256x256xbf16>
    %c2 = arith.constant 2 : index
    %c0_17 = arith.constant 0 : index
    %28 = vector.load %arg4[%c2, %c0_17] : memref<5x256xf32, #tpu.memory_space<vmem>>, vector<1x256xf32>
    %29 = arith.truncf %25 : vector<8x256xf32> to vector<8x256xbf16>
    %cst_18 = arith.constant dense<0.000000e+00> : vector<8x256xf32>
    %30 = tpu.matmul %29, %27, %cst_18 {dimension_numbers = #tpu.dot_dimension_numbers<[1], [0], [0], [1], [0, 0, 1, 1], [], []>} : vector<8x256xbf16>, vector<256x256xbf16>, vector<8x256xf32> -> vector<8x256xf32>
    %31 = vector.broadcast %28 : vector<1x256xf32> to vector<8x256xf32>
    %32 = arith.addf %30, %31 : vector<8x256xf32>
    %cst_19 = arith.constant 0.000000e+00 : f32
    %33 = vector.broadcast %cst_19 : f32 to vector<8x256xf32>
    %34 = arith.maximumf %32, %33 : vector<8x256xf32>
    %c2_20 = arith.constant 2 : index
    %c0_21 = arith.constant 0 : index
    %c0_22 = arith.constant 0 : index
    %35 = vector.load %arg2[%c2_20, %c0_21, %c0_22] : memref<3x256x256xbf16, #tpu.memory_space<vmem>>, vector<1x256x256xbf16>
    %36 = vector.shape_cast %35 : vector<1x256x256xbf16> to vector<256x256xbf16>
    %c3 = arith.constant 3 : index
    %c0_23 = arith.constant 0 : index
    %37 = vector.load %arg4[%c3, %c0_23] : memref<5x256xf32, #tpu.memory_space<vmem>>, vector<1x256xf32>
    %38 = arith.truncf %34 : vector<8x256xf32> to vector<8x256xbf16>
    %cst_24 = arith.constant dense<0.000000e+00> : vector<8x256xf32>
    %39 = tpu.matmul %38, %36, %cst_24 {dimension_numbers = #tpu.dot_dimension_numbers<[1], [0], [0], [1], [0, 0, 1, 1], [], []>} : vector<8x256xbf16>, vector<256x256xbf16>, vector<8x256xf32> -> vector<8x256xf32>
    %40 = vector.broadcast %37 : vector<1x256xf32> to vector<8x256xf32>
    %41 = arith.addf %39, %40 : vector<8x256xf32>
    %cst_25 = arith.constant 0.000000e+00 : f32
    %42 = vector.broadcast %cst_25 : f32 to vector<8x256xf32>
    %43 = arith.maximumf %41, %42 : vector<8x256xf32>
    %c0_26 = arith.constant 0 : index
    %c0_27 = arith.constant 0 : index
    %44 = vector.load %arg3[%c0_26, %c0_27] : memref<256x8xbf16, #tpu.memory_space<vmem>>, vector<256x8xbf16>
    %c4 = arith.constant 4 : index
    %c0_28 = arith.constant 0 : index
    %45 = vector.load %arg4[%c4, %c0_28] : memref<5x256xf32, #tpu.memory_space<vmem>>, vector<1x8xf32>
    %46 = arith.truncf %43 : vector<8x256xf32> to vector<8x256xbf16>
    %cst_29 = arith.constant dense<0.000000e+00> : vector<8x8xf32>
    %47 = tpu.matmul %46, %44, %cst_29 {dimension_numbers = #tpu.dot_dimension_numbers<[1], [0], [0], [1], [0, 0, 1, 1], [], []>} : vector<8x256xbf16>, vector<256x8xbf16>, vector<8x8xf32> -> vector<8x8xf32>
    %48 = vector.broadcast %45 : vector<1x8xf32> to vector<8x8xf32>
    %49 = arith.addf %47, %48 : vector<8x8xf32>
    %c0_30 = arith.constant 0 : index
    %c0_31 = arith.constant 0 : index
    %50 = vector.load %arg5[%c0_30, %c0_31] : memref<8x8xf32, #tpu.memory_space<vmem>>, vector<8x8xf32>
    tpu.vector_store %arg5[%c0_30, %c0_31], %49 {strides = array<i32>} : memref<8x8xf32, #tpu.memory_space<vmem>>, vector<8x8xf32>,
    return
  }
}

</mosaic_0001>

<llo_original>
// kernel: dqn_forward.1
$region0: #{dqn_forward.1}
  #allocation0 [shape = 'u32[]', space=smem, size = 0x4, offset = 0x4, fixed_abs, tag = 'smem constant byte address 0x4 - core index']
  #allocation1 [shape = 'u32[144,128]{1,0:T(1,128)}', space=vmem, size = 0x12000, scoped, tag = 'internal scratch']
  %s0 = inlined_call_operand.vmem [shape: f32[8,32], index: 0, kind: input, shape index: {}]
  %s1 = inlined_call_operand.vmem [shape: bf16[32,256], index: 1, kind: input, shape index: {}]
  %s2 = inlined_call_operand.hbm [shape: bf16[3,256,256], index: 2, kind: input, shape index: {}]
  %s3 = inlined_call_operand.vmem [shape: bf16[256,8], index: 3, kind: input, shape index: {}]
  %s4 = inlined_call_operand.vmem [shape: f32[5,256], index: 4, kind: input, shape index: {}]
  %s5 = inlined_call_operand.hbm [shape: f32[8,8], index: 5, kind: output, shape index: {}]
  %s6 = sld [smem:[#allocation0]]
  $region34: #{dqn_forward.1} parent=0
    _
  %s8 = ssub.s32 1, %s6
  %s9 = scalar_select 0, %s8, %s6
  $region1: #{dqn_forward.1} parent=0
    #allocation2 [shape = 'u8[393216]{0}', space=vmem, size = 0x60000, scoped, tag = 'input window, operand 2, single buffered']
    #allocation3 [shape = 's32[1]{0}', space=sflag, size = 0x4, scoped, tag = 'scoped memory for dqn_forward.1']
    #allocation4 [shape = 's32[1]{0}', space=sflag, size = 0x4, scoped, tag = 'scoped memory for dqn_forward.1']
    #allocation5 [shape = 'u8[4096]{0}', space=vmem, size = 0x1000, scoped, tag = 'output window, operand 0, single buffered']
    %10 = vsyncpa [#allocation3], 0
    %11 = vsyncpa [#allocation4], 0
    // Predicated region
    $region2: #{dqn_forward.1} parent=1 // pred_check
      _
    $region3: #{dqn_forward.1} parent=1 // pred_check_branch
      %13 = sbr.rel (0) target = $region5
    $region4: #{dqn_forward.1} parent=1 // pred_region
      _
    $region5: #{dqn_forward.1} parent=1 // pred_fallthru
      _
    // Predicated region
    $region6: #{dqn_forward.1} parent=1 // pred_check
      _
    $region7: #{dqn_forward.1} parent=1 // pred_check_branch
      %15 = sbr.rel (0) target = $region9
    $region8: #{dqn_forward.1} parent=1 // pred_region
      _
    $region9: #{dqn_forward.1} parent=1 // pred_fallthru
      _
    // Predicated region
    $region10: #{dqn_forward.1} parent=1 // pred_check
      _
    $region11: #{dqn_forward.1} parent=1 // pred_check_branch
      %17 = sbr.rel (0) target = $region13
    $region12: #{dqn_forward.1} parent=1 // pred_region
      %s19 = ssub.s32 12288, 12288
      %20 = vsyncadd [#allocation3], %s19
      %s21 = sshll.u32 [#allocation2], 4
      %s22 = int_to_ptr.vmem [resolvable:$true] %s21
      %27 = dma.hbm_to_vmem [thread:$0]  %s2, 12288, %s22, [#allocation3], 128, 128, 8
    $region13: #{dqn_forward.1} parent=1 // pred_fallthru
      _
    // Predicated region
    $region14: #{dqn_forward.1} parent=1 // pred_check
      _
    $region15: #{dqn_forward.1} parent=1 // pred_check_branch
      %29 = sbr.rel (0) target = $region17
    $region16: #{dqn_forward.1} parent=1 // pred_region
      _
    $region17: #{dqn_forward.1} parent=1 // pred_fallthru
      _
    // Predicated region
    $region18: #{dqn_forward.1} parent=1 // pred_check
      _
    $region19: #{dqn_forward.1} parent=1 // pred_check_branch
      %31 = sbr.rel (0) target = $region21
    $region20: #{dqn_forward.1} parent=1 // pred_region
      _
    $region21: #{dqn_forward.1} parent=1 // pred_fallthru
      _
    // Predicated region
    $region22: #{dqn_forward.1} parent=1 // pred_check
      _
    $region23: #{dqn_forward.1} parent=1 // pred_check_branch
      %33 = sbr.rel (0) target = $region25
    $region24: #{dqn_forward.1} parent=1 // pred_region
      %34 = dma.done [#allocation3], 12288
    $region25: #{dqn_forward.1} parent=1 // pred_fallthru
      _
    %v36 = vld [vmem:[%s0] sm:$0xff]
    %v37 = vmul.f32 %v36, %v36
    %vm38 = vcmask 261120
    %v39 = vsel %vm38, %v37, 0.0
    %v40 = vrot.slane %v39, 4
    %v41 = vadd.f32 %v39, %v40
    %v42 = vrot.slane %v41, 2
    %v43 = vadd.f32 %v41, %v42
    %v44 = vrot.slane %v43, 1
    %v45 = vadd.f32 %v43, %v44
    %v46 = vmax.f32 %v45, 1e-24
    %v47 = vrsqrt.pop %v46
    %v48 = vmul.f32 %v36, %v47
    %v49 = vld [vmem:[%s1] sm:$0xff]
    %v50 = vld [vmem:[%s1 + $0x8] sm:$0xff]
    %v51 = vld [vmem:[%s1 + $0x10] sm:$0xff]
    %v52 = vld [vmem:[%s1 + $0x18] sm:$0xff]
    %v53 = vld [vmem:[%s4] ss:$8 sm:$0x3]
    %v54 = vpack.c.bf16 %v48, %v48
    %v56 = vlaneseq
    %v57 = vshrl.u32 %v56, 7
    %v58 = vsub.s32 0, %v57
    %v59 = vrot.slane %v53, %v58
    %v60 = vlaneseq
    %v61 = vshrl.u32 %v60, 7
    %v62 = vsub.s32 1, %v61
    %v63 = vrot.slane %v53, %v62
    %v70 = vunpack.c.l.b16 %v49
    %v71 = vunpack.c.h.b16 %v49
    %v72 = vunpack.c.l.b16 %v50
    %v73 = vunpack.c.h.b16 %v50
    %v74 = vunpack.c.l.b16 %v51
    %v75 = vunpack.c.h.b16 %v51
    %v76 = vunpack.c.l.b16 %v52
    %v77 = vunpack.c.h.b16 %v52
    %v78 = vpack.c.b16 %v72, %v70
    %v79 = vpack.c.b16 %v73, %v71
    %v80 = vpack.c.b16 %v76, %v74
    %v81 = vpack.c.b16 %v77, %v75
    %v87 = vsel %vm38, %v54, 0
    %89 = vmatprep.subr.bf16.mxu0 0
    %90 = vmatpush1.bf16.msra.mxu0 0
    %91 = vmatprep.subr.bf16.mxu0 0
    %92 = vmatpush1.bf16.msra.mxu0 0
    %93 = vmatprep.subr.bf16.mxu0 0
    %94 = vmatpush1.bf16.msra.mxu0 0
    %95 = vmatprep.subr.bf16.mxu0 0
    %96 = vmatpush1.bf16.msra.mxu0 0
    %97 = vmatprep.subr.bf16.mxu0 0
    %98 = vmatpush1.bf16.msra.mxu0 0
    %99 = vmatprep.subr.bf16.mxu0 0
    %100 = vmatpush1.bf16.msra.mxu0 0
    %101 = vmatprep.subr.bf16.mxu0 %v81
    %102 = vmatpush1.bf16.msra.mxu0 %v80
    %103 = vmatprep.subr.bf16.mxu0 %v79
    %104 = vmatpush1.bf16.msra.mxu0 %v78
    %105 = vmatprep.subr.bf16.mxu0 0
    %106 = vmatpush2.bf16.msra.mxu0 0
    %107 = vmatprep.subr.bf16.mxu0 0
    %108 = vmatpush2.bf16.msra.mxu0 0
    %109 = vmatprep.subr.bf16.mxu0 0
    %110 = vmatpush2.bf16.msra.mxu0 0
    %111 = vmatprep.subr.bf16.mxu0 0
    %112 = vmatpush2.bf16.msra.mxu0 0
    %113 = vmatprep.subr.bf16.mxu0 0
    %114 = vmatpush2.bf16.msra.mxu0 0
    %115 = vmatprep.subr.bf16.mxu0 0
    %116 = vmatpush2.bf16.msra.mxu0 0
    %117 = vmatprep.subr.bf16.mxu0 0
    %118 = vmatpush2.bf16.msra.mxu0 0
    %119 = vmatprep.subr.bf16.mxu0 0
    %120 = vmatpush2.bf16.msra.mxu0 0
    %121 = vmatprep.mubr.bf16.mxu0 0
    %122 = vmatmul.mubr.bf16.gmra.mxu0 %v87
    %v123 = vpop.f32.mrf.mxu0
    %v124 = vadd.f32 %v59, %v123
    %v125 = vpop.f32.mrf.mxu0
    %v126 = vadd.f32 %v63, %v125
    %v127 = vpop.f32.mrf.mxu0
    %v128 = vpop.f32.mrf.mxu0
    %129 = vdwg.mxu0
    %v130 = vmax.f32 %v124, 0.0
    %v131 = vmax.f32 %v126, 0.0
    %v132 = vld [vmem:[#allocation2] sm:$0xff]
    %v133 = vld [vmem:[#allocation2 + $0x8] sm:$0xff]
    %v134 = vld [vmem:[#allocation2 + $0x10] sm:$0xff]
    %v135 = vld [vmem:[#allocation2 + $0x18] sm:$0xff]
    %v136 = vld [vmem:[#allocation2 + $0x20] sm:$0xff]
    %v137 = vld [vmem:[#allocation2 + $0x28] sm:$0xff]
    %v138 = vld [vmem:[#allocation2 + $0x30] sm:$0xff]
    %v139 = vld [vmem:[#allocation2 + $0x38] sm:$0xff]
    %v140 = vld [vmem:[#allocation2 + $0x40] sm:$0xff]
    %v141 = vld [vmem:[#allocation2 + $0x48] sm:$0xff]
    %v142 = vld [vmem:[#allocation2 + $0x50] sm:$0xff]
    %v143 = vld [vmem:[#allocation2 + $0x58] sm:$0xff]
    %v144 = vld [vmem:[#allocation2 + $0x60] sm:$0xff]
    %v145 = vld [vmem:[#allocation2 + $0x68] sm:$0xff]
    %v146 = vld [vmem:[#allocation2 + $0x70] sm:$0xff]
    %v147 = vld [vmem:[#allocation2 + $0x78] sm:$0xff]
    %v148 = vld [vmem:[#allocation2 + $0x80] sm:$0xff]
    %v149 = vld [vmem:[#allocation2 + $0x88] sm:$0xff]
    %v150 = vld [vmem:[#allocation2 + $0x90] sm:$0xff]
    %v151 = vld [vmem:[#allocation2 + $0x98] sm:$0xff]
    %v152 = vld [vmem:[#allocation2 + $0xa0] sm:$0xff]
    %v153 = vld [vmem:[#allocation2 + $0xa8] sm:$0xff]
    %v154 = vld [vmem:[#allocation2 + $0xb0] sm:$0xff]
    %v155 = vld [vmem:[#allocation2 + $0xb8] sm:$0xff]
    %v156 = vld [vmem:[#allocation2 + $0xc0] sm:$0xff]
    %v157 = vld [vmem:[#allocation2 + $0xc8] sm:$0xff]
    %v158 = vld [vmem:[#allocation2 + $0xd0] sm:$0xff]
    %v159 = vld [vmem:[#allocation2 + $0xd8] sm:$0xff]
    %v160 = vld [vmem:[#allocation2 + $0xe0] sm:$0xff]
    %v161 = vld [vmem:[#allocation2 + $0xe8] sm:$0xff]
    %v162 = vld [vmem:[#allocation2 + $0xf0] sm:$0xff]
    %v163 = vld [vmem:[#allocation2 + $0xf8] sm:$0xff]
    %s164 = scalar_lea.vmem %s4, 1
    %v165 = vld [vmem:[%s164] ss:$8 sm:$0x3]
    %v166 = vpack.c.bf16 %v130, %v130
    %v167 = vpack.c.bf16 %v131, %v131
    %v169 = vlaneseq
    %v170 = vshrl.u32 %v169, 7
    %v171 = vsub.s32 0, %v170
    %v172 = vrot.slane %v165, %v171
    %v173 = vlaneseq
    %v174 = vshrl.u32 %v173, 7
    %v175 = vsub.s32 1, %v174
    %v176 = vrot.slane %v165, %v175
    %v211 = vunpack.c.l.b16 %v132
    %v212 = vunpack.c.h.b16 %v132
    %v213 = vunpack.c.l.b16 %v133
    %v214 = vunpack.c.h.b16 %v133
    %v215 = vunpack.c.l.b16 %v134
    %v216 = vunpack.c.h.b16 %v134
    %v217 = vunpack.c.l.b16 %v135
    %v218 = vunpack.c.h.b16 %v135
    %v219 = vunpack.c.l.b16 %v136
    %v220 = vunpack.c.h.b16 %v136
    %v221 = vunpack.c.l.b16 %v137
    %v222 = vunpack.c.h.b16 %v137
    %v223 = vunpack.c.l.b16 %v138
    %v224 = vunpack.c.h.b16 %v138
    %v225 = vunpack.c.l.b16 %v139
    %v226 = vunpack.c.h.b16 %v139
    %v227 = vunpack.c.l.b16 %v140
    %v228 = vunpack.c.h.b16 %v140
    %v229 = vunpack.c.l.b16 %v141
    %v230 = vunpack.c.h.b16 %v141
    %v231 = vunpack.c.l.b16 %v142
    %v232 = vunpack.c.h.b16 %v142
    %v233 = vunpack.c.l.b16 %v143
    %v234 = vunpack.c.h.b16 %v143
    %v235 = vunpack.c.l.b16 %v144
    %v236 = vunpack.c.h.b16 %v144
    %v237 = vunpack.c.l.b16 %v145
    %v238 = vunpack.c.h.b16 %v145
    %v239 = vunpack.c.l.b16 %v146
    %v240 = vunpack.c.h.b16 %v146
    %v241 = vunpack.c.l.b16 %v147
    %v242 = vunpack.c.h.b16 %v147
    %v243 = vunpack.c.l.b16 %v148
    %v244 = vunpack.c.h.b16 %v148
    %v245 = vunpack.c.l.b16 %v149
    %v246 = vunpack.c.h.b16 %v149
    %v247 = vunpack.c.l.b16 %v150
    %v248 = vunpack.c.h.b16 %v150
    %v249 = vunpack.c.l.b16 %v151
    %v250 = vunpack.c.h.b16 %v151
    %v251 = vunpack.c.l.b16 %v152
    %v252 = vunpack.c.h.b16 %v152
    %v253 = vunpack.c.l.b16 %v153
    %v254 = vunpack.c.h.b16 %v153
    %v255 = vunpack.c.l.b16 %v154
    %v256 = vunpack.c.h.b16 %v154
    %v257 = vunpack.c.l.b16 %v155
    %v258 = vunpack.c.h.b16 %v155
    %v259 = vunpack.c.l.b16 %v156
    %v260 = vunpack.c.h.b16 %v156
    %v261 = vunpack.c.l.b16 %v157
    %v262 = vunpack.c.h.b16 %v157
    %v263 = vunpack.c.l.b16 %v158
    %v264 = vunpack.c.h.b16 %v158
    %v265 = vunpack.c.l.b16 %v159
    %v266 = vunpack.c.h.b16 %v159
    %v267 = vunpack.c.l.b16 %v160
    %v268 = vunpack.c.h.b16 %v160
    %v269 = vunpack.c.l.b16 %v161
    %v270 = vunpack.c.h.b16 %v161
    %v271 = vunpack.c.l.b16 %v162
    %v272 = vunpack.c.h.b16 %v162
    %v273 = vunpack.c.l.b16 %v163
    %v274 = vunpack.c.h.b16 %v163
    %v275 = vpack.c.b16 %v213, %v211
    %v276 = vpack.c.b16 %v214, %v212
    %v277 = vpack.c.b16 %v217, %v215
    %v278 = vpack.c.b16 %v218, %v216
    %v279 = vpack.c.b16 %v221, %v219
    %v280 = vpack.c.b16 %v222, %v220
    %v281 = vpack.c.b16 %v225, %v223
    %v282 = vpack.c.b16 %v226, %v224
    %v283 = vpack.c.b16 %v229, %v227
    %v284 = vpack.c.b16 %v230, %v228
    %v285 = vpack.c.b16 %v233, %v231
    %v286 = vpack.c.b16 %v234, %v232
    %v287 = vpack.c.b16 %v237, %v235
    %v288 = vpack.c.b16 %v238, %v236
    %v289 = vpack.c.b16 %v241, %v239
    %v290 = vpack.c.b16 %v242, %v240
    %v291 = vpack.c.b16 %v245, %v243
    %v292 = vpack.c.b16 %v246, %v244
    %v293 = vpack.c.b16 %v249, %v247
    %v294 = vpack.c.b16 %v250, %v248
    %v295 = vpack.c.b16 %v253, %v251
    %v296 = vpack.c.b16 %v254, %v252
    %v297 = vpack.c.b16 %v257, %v255
    %v298 = vpack.c.b16 %v258, %v256
    %v299 = vpack.c.b16 %v261, %v259
    %v300 = vpack.c.b16 %v262, %v260
    %v301 = vpack.c.b16 %v265, %v263
    %v302 = vpack.c.b16 %v266, %v264
    %v303 = vpack.c.b16 %v269, %v267
    %v304 = vpack.c.b16 %v270, %v268
    %v305 = vpack.c.b16 %v273, %v271
    %v306 = vpack.c.b16 %v274, %v272
    %339 = vmatprep.subr.bf16.mxu0 %v290
    %340 = vmatpush1.bf16.msra.mxu0 %v289
    %341 = vmatprep.subr.bf16.mxu0 %v288
    %342 = vmatpush1.bf16.msra.mxu0 %v287
    %343 = vmatprep.subr.bf16.mxu0 %v286
    %344 = vmatpush1.bf16.msra.mxu0 %v285
    %345 = vmatprep.subr.bf16.mxu0 %v284
    %346 = vmatpush1.bf16.msra.mxu0 %v283
    %347 = vmatprep.subr.bf16.mxu0 %v282
    %348 = vmatpush1.bf16.msra.mxu0 %v281
    %349 = vmatprep.subr.bf16.mxu0 %v280
    %350 = vmatpush1.bf16.msra.mxu0 %v279
    %351 = vmatprep.subr.bf16.mxu0 %v278
    %352 = vmatpush1.bf16.msra.mxu0 %v277
    %353 = vmatprep.subr.bf16.mxu0 %v276
    %354 = vmatpush1.bf16.msra.mxu0 %v275
    %355 = vmatprep.subr.bf16.mxu0 %v306
    %356 = vmatpush2.bf16.msra.mxu0 %v305
    %357 = vmatprep.subr.bf16.mxu0 %v304
    %358 = vmatpush2.bf16.msra.mxu0 %v303
    %359 = vmatprep.subr.bf16.mxu0 %v302
    %360 = vmatpush2.bf16.msra.mxu0 %v301
    %361 = vmatprep.subr.bf16.mxu0 %v300
    %362 = vmatpush2.bf16.msra.mxu0 %v299
    %363 = vmatprep.subr.bf16.mxu0 %v298
    %364 = vmatpush2.bf16.msra.mxu0 %v297
    %365 = vmatprep.subr.bf16.mxu0 %v296
    %366 = vmatpush2.bf16.msra.mxu0 %v295
    %367 = vmatprep.subr.bf16.mxu0 %v294
    %368 = vmatpush2.bf16.msra.mxu0 %v293
    %369 = vmatprep.subr.bf16.mxu0 %v292
    %370 = vmatpush2.bf16.msra.mxu0 %v291
    %371 = vmatprep.mubr.bf16.mxu0 %v167
    %372 = vmatmul.mubr.bf16.gmra.mxu0 %v166
    %v373 = vpop.f32.mrf.mxu0
    %v374 = vadd.f32 %v172, %v373
    %v375 = vpop.f32.mrf.mxu0
    %v376 = vadd.f32 %v176, %v375
    %v377 = vpop.f32.mrf.mxu0
    %v378 = vpop.f32.mrf.mxu0
    %379 = vdwg.mxu0
    %v380 = vmax.f32 %v374, 0.0
    %v381 = vmax.f32 %v376, 0.0
    %s382 = scalar_lea.vmem [#allocation2], 256
    %v383 = vld [vmem:[%s382] sm:$0xff]
    %v384 = vld [vmem:[%s382 + $0x8] sm:$0xff]
    %v385 = vld [vmem:[%s382 + $0x10] sm:$0xff]
    %v386 = vld [vmem:[%s382 + $0x18] sm:$0xff]
    %v387 = vld [vmem:[%s382 + $0x20] sm:$0xff]
    %v388 = vld [vmem:[%s382 + $0x28] sm:$0xff]
    %v389 = vld [vmem:[%s382 + $0x30] sm:$0xff]
    %v390 = vld [vmem:[%s382 + $0x38] sm:$0xff]
    %v391 = vld [vmem:[%s382 + $0x40] sm:$0xff]
    %v392 = vld [vmem:[%s382 + $0x48] sm:$0xff]
    %v393 = vld [vmem:[%s382 + $0x50] sm:$0xff]
    %v394 = vld [vmem:[%s382 + $0x58] sm:$0xff]
    %v395 = vld [vmem:[%s382 + $0x60] sm:$0xff]
    %v396 = vld [vmem:[%s382 + $0x68] sm:$0xff]
    %v397 = vld [vmem:[%s382 + $0x70] sm:$0xff]
    %v398 = vld [vmem:[%s382 + $0x78] sm:$0xff]
    %v399 = vld [vmem:[%s382 + $0x80] sm:$0xff]
    %v400 = vld [vmem:[%s382 + $0x88] sm:$0xff]
    %v401 = vld [vmem:[%s382 + $0x90] sm:$0xff]
    %v402 = vld [vmem:[%s382 + $0x98] sm:$0xff]
    %v403 = vld [vmem:[%s382 + $0xa0] sm:$0xff]
    %v404 = vld [vmem:[%s382 + $0xa8] sm:$0xff]
    %v405 = vld [vmem:[%s382 + $0xb0] sm:$0xff]
    %v406 = vld [vmem:[%s382 + $0xb8] sm:$0xff]
    %v407 = vld [vmem:[%s382 + $0xc0] sm:$0xff]
    %v408 = vld [vmem:[%s382 + $0xc8] sm:$0xff]
    %v409 = vld [vmem:[%s382 + $0xd0] sm:$0xff]
    %v410 = vld [vmem:[%s382 + $0xd8] sm:$0xff]
    %v411 = vld [vmem:[%s382 + $0xe0] sm:$0xff]
    %v412 = vld [vmem:[%s382 + $0xe8] sm:$0xff]
    %v413 = vld [vmem:[%s382 + $0xf0] sm:$0xff]
    %v414 = vld [vmem:[%s382 + $0xf8] sm:$0xff]
    %s415 = scalar_lea.vmem %s4, 2
    %v416 = vld [vmem:[%s415] ss:$8 sm:$0x3]
    %v417 = vpack.c.bf16 %v380, %v380
    %v418 = vpack.c.bf16 %v381, %v381
    %v420 = vlaneseq
    %v421 = vshrl.u32 %v420, 7
    %v422 = vsub.s32 0, %v421
    %v423 = vrot.slane %v416, %v422
    %v424 = vlaneseq
    %v425 = vshrl.u32 %v424, 7
    %v426 = vsub.s32 1, %v425
    %v427 = vrot.slane %v416, %v426
    %v462 = vunpack.c.l.b16 %v383
    %v463 = vunpack.c.h.b16 %v383
    %v464 = vunpack.c.l.b16 %v384
    %v465 = vunpack.c.h.b16 %v384
    %v466 = vunpack.c.l.b16 %v385
    %v467 = vunpack.c.h.b16 %v385
    %v468 = vunpack.c.l.b16 %v386
    %v469 = vunpack.c.h.b16 %v386
    %v470 = vunpack.c.l.b16 %v387
    %v471 = vunpack.c.h.b16 %v387
    %v472 = vunpack.c.l.b16 %v388
    %v473 = vunpack.c.h.b16 %v388
    %v474 = vunpack.c.l.b16 %v389
    %v475 = vunpack.c.h.b16 %v389
    %v476 = vunpack.c.l.b16 %v390
    %v477 = vunpack.c.h.b16 %v390
    %v478 = vunpack.c.l.b16 %v391
    %v479 = vunpack.c.h.b16 %v391
    %v480 = vunpack.c.l.b16 %v392
    %v481 = vunpack.c.h.b16 %v392
    %v482 = vunpack.c.l.b16 %v393
    %v483 = vunpack.c.h.b16 %v393
    %v484 = vunpack.c.l.b16 %v394
    %v485 = vunpack.c.h.b16 %v394
    %v486 = vunpack.c.l.b16 %v395
    %v487 = vunpack.c.h.b16 %v395
    %v488 = vunpack.c.l.b16 %v396
    %v489 = vunpack.c.h.b16 %v396
    %v490 = vunpack.c.l.b16 %v397
    %v491 = vunpack.c.h.b16 %v397
    %v492 = vunpack.c.l.b16 %v398
    %v493 = vunpack.c.h.b16 %v398
    %v494 = vunpack.c.l.b16 %v399
    %v495 = vunpack.c.h.b16 %v399
    %v496 = vunpack.c.l.b16 %v400
    %v497 = vunpack.c.h.b16 %v400
    %v498 = vunpack.c.l.b16 %v401
    %v499 = vunpack.c.h.b16 %v401
    %v500 = vunpack.c.l.b16 %v402
    %v501 = vunpack.c.h.b16 %v402
    %v502 = vunpack.c.l.b16 %v403
    %v503 = vunpack.c.h.b16 %v403
    %v504 = vunpack.c.l.b16 %v404
    %v505 = vunpack.c.h.b16 %v404
    %v506 = vunpack.c.l.b16 %v405
    %v507 = vunpack.c.h.b16 %v405
    %v508 = vunpack.c.l.b16 %v406
    %v509 = vunpack.c.h.b16 %v406
    %v510 = vunpack.c.l.b16 %v407
    %v511 = vunpack.c.h.b16 %v407
    %v512 = vunpack.c.l.b16 %v408
    %v513 = vunpack.c.h.b16 %v408
    %v514 = vunpack.c.l.b16 %v409
    %v515 = vunpack.c.h.b16 %v409
    %v516 = vunpack.c.l.b16 %v410
    %v517 = vunpack.c.h.b16 %v410
    %v518 = vunpack.c.l.b16 %v411
    %v519 = vunpack.c.h.b16 %v411
    %v520 = vunpack.c.l.b16 %v412
    %v521 = vunpack.c.h.b16 %v412
    %v522 = vunpack.c.l.b16 %v413
    %v523 = vunpack.c.h.b16 %v413
    %v524 = vunpack.c.l.b16 %v414
    %v525 = vunpack.c.h.b16 %v414
    %v526 = vpack.c.b16 %v464, %v462
    %v527 = vpack.c.b16 %v465, %v463
    %v528 = vpack.c.b16 %v468, %v466
    %v529 = vpack.c.b16 %v469, %v467
    %v530 = vpack.c.b16 %v472, %v470
    %v531 = vpack.c.b16 %v473, %v471
    %v532 = vpack.c.b16 %v476, %v474
    %v533 = vpack.c.b16 %v477, %v475
    %v534 = vpack.c.b16 %v480, %v478
    %v535 = vpack.c.b16 %v481, %v479
    %v536 = vpack.c.b16 %v484, %v482
    %v537 = vpack.c.b16 %v485, %v483
    %v538 = vpack.c.b16 %v488, %v486
    %v539 = vpack.c.b16 %v489, %v487
    %v540 = vpack.c.b16 %v492, %v490
    %v541 = vpack.c.b16 %v493, %v491
    %v542 = vpack.c.b16 %v496, %v494
    %v543 = vpack.c.b16 %v497, %v495
    %v544 = vpack.c.b16 %v500, %v498
    %v545 = vpack.c.b16 %v501, %v499
    %v546 = vpack.c.b16 %v504, %v502
    %v547 = vpack.c.b16 %v505, %v503
    %v548 = vpack.c.b16 %v508, %v506
    %v549 = vpack.c.b16 %v509, %v507
    %v550 = vpack.c.b16 %v512, %v510
    %v551 = vpack.c.b16 %v513, %v511
    %v552 = vpack.c.b16 %v516, %v514
    %v553 = vpack.c.b16 %v517, %v515
    %v554 = vpack.c.b16 %v520, %v518
    %v555 = vpack.c.b16 %v521, %v519
    %v556 = vpack.c.b16 %v524, %v522
    %v557 = vpack.c.b16 %v525, %v523
    %590 = vmatprep.subr.bf16.mxu0 %v541
    %591 = vmatpush1.bf16.msra.mxu0 %v540
    %592 = vmatprep.subr.bf16.mxu0 %v539
    %593 = vmatpush1.bf16.msra.mxu0 %v538
    %594 = vmatprep.subr.bf16.mxu0 %v537
    %595 = vmatpush1.bf16.msra.mxu0 %v536
    %596 = vmatprep.subr.bf16.mxu0 %v535
    %597 = vmatpush1.bf16.msra.mxu0 %v534
    %598 = vmatprep.subr.bf16.mxu0 %v533
    %599 = vmatpush1.bf16.msra.mxu0 %v532
    %600 = vmatprep.subr.bf16.mxu0 %v531
    %601 = vmatpush1.bf16.msra.mxu0 %v530
    %602 = vmatprep.subr.bf16.mxu0 %v529
    %603 = vmatpush1.bf16.msra.mxu0 %v528
    %604 = vmatprep.subr.bf16.mxu0 %v527
    %605 = vmatpush1.bf16.msra.mxu0 %v526
    %606 = vmatprep.subr.bf16.mxu0 %v557
    %607 = vmatpush2.bf16.msra.mxu0 %v556
    %608 = vmatprep.subr.bf16.mxu0 %v555
    %609 = vmatpush2.bf16.msra.mxu0 %v554
    %610 = vmatprep.subr.bf16.mxu0 %v553
    %611 = vmatpush2.bf16.msra.mxu0 %v552
    %612 = vmatprep.subr.bf16.mxu0 %v551
    %613 = vmatpush2.bf16.msra.mxu0 %v550
    %614 = vmatprep.subr.bf16.mxu0 %v549
    %615 = vmatpush2.bf16.msra.mxu0 %v548
    %616 = vmatprep.subr.bf16.mxu0 %v547
    %617 = vmatpush2.bf16.msra.mxu0 %v546
    %618 = vmatprep.subr.bf16.mxu0 %v545
    %619 = vmatpush2.bf16.msra.mxu0 %v544
    %620 = vmatprep.subr.bf16.mxu0 %v543
    %621 = vmatpush2.bf16.msra.mxu0 %v542
    %622 = vmatprep.mubr.bf16.mxu0 %v418
    %623 = vmatmul.mubr.bf16.gmra.mxu0 %v417
    %v624 = vpop.f32.mrf.mxu0
    %v625 = vadd.f32 %v423, %v624
    %v626 = vpop.f32.mrf.mxu0
    %v627 = vadd.f32 %v427, %v626
    %v628 = vpop.f32.mrf.mxu0
    %v629 = vpop.f32.mrf.mxu0
    %630 = vdwg.mxu0
    %v631 = vmax.f32 %v625, 0.0
    %v632 = vmax.f32 %v627, 0.0
    %s633 = scalar_lea.vmem [#allocation2], 512
    %v634 = vld [vmem:[%s633] sm:$0xff]
    %v635 = vld [vmem:[%s633 + $0x8] sm:$0xff]
    %v636 = vld [vmem:[%s633 + $0x10] sm:$0xff]
    %v637 = vld [vmem:[%s633 + $0x18] sm:$0xff]
    %v638 = vld [vmem:[%s633 + $0x20] sm:$0xff]
    %v639 = vld [vmem:[%s633 + $0x28] sm:$0xff]
    %v640 = vld [vmem:[%s633 + $0x30] sm:$0xff]
    %v641 = vld [vmem:[%s633 + $0x38] sm:$0xff]
    %v642 = vld [vmem:[%s633 + $0x40] sm:$0xff]
    %v643 = vld [vmem:[%s633 + $0x48] sm:$0xff]
    %v644 = vld [vmem:[%s633 + $0x50] sm:$0xff]
    %v645 = vld [vmem:[%s633 + $0x58] sm:$0xff]
    %v646 = vld [vmem:[%s633 + $0x60] sm:$0xff]
    %v647 = vld [vmem:[%s633 + $0x68] sm:$0xff]
    %v648 = vld [vmem:[%s633 + $0x70] sm:$0xff]
    %v649 = vld [vmem:[%s633 + $0x78] sm:$0xff]
    %v650 = vld [vmem:[%s633 + $0x80] sm:$0xff]
    %v651 = vld [vmem:[%s633 + $0x88] sm:$0xff]
    %v652 = vld [vmem:[%s633 + $0x90] sm:$0xff]
    %v653 = vld [vmem:[%s633 + $0x98] sm:$0xff]
    %v654 = vld [vmem:[%s633 + $0xa0] sm:$0xff]
    %v655 = vld [vmem:[%s633 + $0xa8] sm:$0xff]
    %v656 = vld [vmem:[%s633 + $0xb0] sm:$0xff]
    %v657 = vld [vmem:[%s633 + $0xb8] sm:$0xff]
    %v658 = vld [vmem:[%s633 + $0xc0] sm:$0xff]
    %v659 = vld [vmem:[%s633 + $0xc8] sm:$0xff]
    %v660 = vld [vmem:[%s633 + $0xd0] sm:$0xff]
    %v661 = vld [vmem:[%s633 + $0xd8] sm:$0xff]
    %v662 = vld [vmem:[%s633 + $0xe0] sm:$0xff]
    %v663 = vld [vmem:[%s633 + $0xe8] sm:$0xff]
    %v664 = vld [vmem:[%s633 + $0xf0] sm:$0xff]
    %v665 = vld [vmem:[%s633 + $0xf8] sm:$0xff]
    %s666 = scalar_lea.vmem %s4, 3
    %v667 = vld [vmem:[%s666] ss:$8 sm:$0x3]
    %v668 = vpack.c.bf16 %v631, %v631
    %v669 = vpack.c.bf16 %v632, %v632
    %v671 = vlaneseq
    %v672 = vshrl.u32 %v671, 7
    %v673 = vsub.s32 0, %v672
    %v674 = vrot.slane %v667, %v673
    %v675 = vlaneseq
    %v676 = vshrl.u32 %v675, 7
    %v677 = vsub.s32 1, %v676
    %v678 = vrot.slane %v667, %v677
    %v713 = vunpack.c.l.b16 %v634
    %v714 = vunpack.c.h.b16 %v634
    %v715 = vunpack.c.l.b16 %v635
    %v716 = vunpack.c.h.b16 %v635
    %v717 = vunpack.c.l.b16 %v636
    %v718 = vunpack.c.h.b16 %v636
    %v719 = vunpack.c.l.b16 %v637
    %v720 = vunpack.c.h.b16 %v637
    %v721 = vunpack.c.l.b16 %v638
    %v722 = vunpack.c.h.b16 %v638
    %v723 = vunpack.c.l.b16 %v639
    %v724 = vunpack.c.h.b16 %v639
    %v725 = vunpack.c.l.b16 %v640
    %v726 = vunpack.c.h.b16 %v640
    %v727 = vunpack.c.l.b16 %v641
    %v728 = vunpack.c.h.b16 %v641
    %v729 = vunpack.c.l.b16 %v642
    %v730 = vunpack.c.h.b16 %v642
    %v731 = vunpack.c.l.b16 %v643
    %v732 = vunpack.c.h.b16 %v643
    %v733 = vunpack.c.l.b16 %v644
    %v734 = vunpack.c.h.b16 %v644
    %v735 = vunpack.c.l.b16 %v645
    %v736 = vunpack.c.h.b16 %v645
    %v737 = vunpack.c.l.b16 %v646
    %v738 = vunpack.c.h.b16 %v646
    %v739 = vunpack.c.l.b16 %v647
    %v740 = vunpack.c.h.b16 %v647
    %v741 = vunpack.c.l.b16 %v648
    %v742 = vunpack.c.h.b16 %v648
    %v743 = vunpack.c.l.b16 %v649
    %v744 = vunpack.c.h.b16 %v649
    %v745 = vunpack.c.l.b16 %v650
    %v746 = vunpack.c.h.b16 %v650
    %v747 = vunpack.c.l.b16 %v651
    %v748 = vunpack.c.h.b16 %v651
    %v749 = vunpack.c.l.b16 %v652
    %v750 = vunpack.c.h.b16 %v652
    %v751 = vunpack.c.l.b16 %v653
    %v752 = vunpack.c.h.b16 %v653
    %v753 = vunpack.c.l.b16 %v654
    %v754 = vunpack.c.h.b16 %v654
    %v755 = vunpack.c.l.b16 %v655
    %v756 = vunpack.c.h.b16 %v655
    %v757 = vunpack.c.l.b16 %v656
    %v758 = vunpack.c.h.b16 %v656
    %v759 = vunpack.c.l.b16 %v657
    %v760 = vunpack.c.h.b16 %v657
    %v761 = vunpack.c.l.b16 %v658
    %v762 = vunpack.c.h.b16 %v658
    %v763 = vunpack.c.l.b16 %v659
    %v764 = vunpack.c.h.b16 %v659
    %v765 = vunpack.c.l.b16 %v660
    %v766 = vunpack.c.h.b16 %v660
    %v767 = vunpack.c.l.b16 %v661
    %v768 = vunpack.c.h.b16 %v661
    %v769 = vunpack.c.l.b16 %v662
    %v770 = vunpack.c.h.b16 %v662
    %v771 = vunpack.c.l.b16 %v663
    %v772 = vunpack.c.h.b16 %v663
    %v773 = vunpack.c.l.b16 %v664
    %v774 = vunpack.c.h.b16 %v664
    %v775 = vunpack.c.l.b16 %v665
    %v776 = vunpack.c.h.b16 %v665
    %v777 = vpack.c.b16 %v715, %v713
    %v778 = vpack.c.b16 %v716, %v714
    %v779 = vpack.c.b16 %v719, %v717
    %v780 = vpack.c.b16 %v720, %v718
    %v781 = vpack.c.b16 %v723, %v721
    %v782 = vpack.c.b16 %v724, %v722
    %v783 = vpack.c.b16 %v727, %v725
    %v784 = vpack.c.b16 %v728, %v726
    %v785 = vpack.c.b16 %v731, %v729
    %v786 = vpack.c.b16 %v732, %v730
    %v787 = vpack.c.b16 %v735, %v733
    %v788 = vpack.c.b16 %v736, %v734
    %v789 = vpack.c.b16 %v739, %v737
    %v790 = vpack.c.b16 %v740, %v738
    %v791 = vpack.c.b16 %v743, %v741
    %v792 = vpack.c.b16 %v744, %v742
    %v793 = vpack.c.b16 %v747, %v745
    %v794 = vpack.c.b16 %v748, %v746
    %v795 = vpack.c.b16 %v751, %v749
    %v796 = vpack.c.b16 %v752, %v750
    %v797 = vpack.c.b16 %v755, %v753
    %v798 = vpack.c.b16 %v756, %v754
    %v799 = vpack.c.b16 %v759, %v757
    %v800 = vpack.c.b16 %v760, %v758
    %v801 = vpack.c.b16 %v763, %v761
    %v802 = vpack.c.b16 %v764, %v762
    %v803 = vpack.c.b16 %v767, %v765
    %v804 = vpack.c.b16 %v768, %v766
    %v805 = vpack.c.b16 %v771, %v769
    %v806 = vpack.c.b16 %v772, %v770
    %v807 = vpack.c.b16 %v775, %v773
    %v808 = vpack.c.b16 %v776, %v774
    %841 = vmatprep.subr.bf16.mxu0 %v792
    %842 = vmatpush1.bf16.msra.mxu0 %v791
    %843 = vmatprep.subr.bf16.mxu0 %v790
    %844 = vmatpush1.bf16.msra.mxu0 %v789
    %845 = vmatprep.subr.bf16.mxu0 %v788
    %846 = vmatpush1.bf16.msra.mxu0 %v787
    %847 = vmatprep.subr.bf16.mxu0 %v786
    %848 = vmatpush1.bf16.msra.mxu0 %v785
    %849 = vmatprep.subr.bf16.mxu0 %v784
    %850 = vmatpush1.bf16.msra.mxu0 %v783
    %851 = vmatprep.subr.bf16.mxu0 %v782
    %852 = vmatpush1.bf16.msra.mxu0 %v781
    %853 = vmatprep.subr.bf16.mxu0 %v780
    %854 = vmatpush1.bf16.msra.mxu0 %v779
    %855 = vmatprep.subr.bf16.mxu0 %v778
    %856 = vmatpush1.bf16.msra.mxu0 %v777
    %857 = vmatprep.subr.bf16.mxu0 %v808
    %858 = vmatpush2.bf16.msra.mxu0 %v807
    %859 = vmatprep.subr.bf16.mxu0 %v806
    %860 = vmatpush2.bf16.msra.mxu0 %v805
    %861 = vmatprep.subr.bf16.mxu0 %v804
    %862 = vmatpush2.bf16.msra.mxu0 %v803
    %863 = vmatprep.subr.bf16.mxu0 %v802
    %864 = vmatpush2.bf16.msra.mxu0 %v801
    %865 = vmatprep.subr.bf16.mxu0 %v800
    %866 = vmatpush2.bf16.msra.mxu0 %v799
    %867 = vmatprep.subr.bf16.mxu0 %v798
    %868 = vmatpush2.bf16.msra.mxu0 %v797
    %869 = vmatprep.subr.bf16.mxu0 %v796
    %870 = vmatpush2.bf16.msra.mxu0 %v795
    %871 = vmatprep.subr.bf16.mxu0 %v794
    %872 = vmatpush2.bf16.msra.mxu0 %v793
    %873 = vmatprep.mubr.bf16.mxu0 %v669
    %874 = vmatmul.mubr.bf16.gmra.mxu0 %v668
    %v875 = vpop.f32.mrf.mxu0
    %v876 = vadd.f32 %v674, %v875
    %v877 = vpop.f32.mrf.mxu0
    %v878 = vadd.f32 %v678, %v877
    %v879 = vpop.f32.mrf.mxu0
    %v880 = vpop.f32.mrf.mxu0
    %881 = vdwg.mxu0
    %v882 = vmax.f32 %v876, 0.0
    %v883 = vmax.f32 %v878, 0.0
    %v884 = vld [vmem:[%s3] sm:$0xf]
    %v885 = vld [vmem:[%s3 + $0x4] sm:$0xf]
    %v886 = vld [vmem:[%s3 + $0x8] sm:$0xf]
    %v887 = vld [vmem:[%s3 + $0xc] sm:$0xf]
    %v888 = vld [vmem:[%s3 + $0x10] sm:$0xf]
    %v889 = vld [vmem:[%s3 + $0x14] sm:$0xf]
    %v890 = vld [vmem:[%s3 + $0x18] sm:$0xf]
    %v891 = vld [vmem:[%s3 + $0x1c] sm:$0xf]
    %v892 = vld [vmem:[%s3 + $0x20] sm:$0xf]
    %v893 = vld [vmem:[%s3 + $0x24] sm:$0xf]
    %v894 = vld [vmem:[%s3 + $0x28] sm:$0xf]
    %v895 = vld [vmem:[%s3 + $0x2c] sm:$0xf]
    %v896 = vld [vmem:[%s3 + $0x30] sm:$0xf]
    %v897 = vld [vmem:[%s3 + $0x34] sm:$0xf]
    %v898 = vld [vmem:[%s3 + $0x38] sm:$0xf]
    %v899 = vld [vmem:[%s3 + $0x3c] sm:$0xf]
    %v900 = vld [vmem:[%s3 + $0x40] sm:$0xf]
    %v901 = vld [vmem:[%s3 + $0x44] sm:$0xf]
    %v902 = vld [vmem:[%s3 + $0x48] sm:$0xf]
    %v903 = vld [vmem:[%s3 + $0x4c] sm:$0xf]
    %v904 = vld [vmem:[%s3 + $0x50] sm:$0xf]
    %v905 = vld [vmem:[%s3 + $0x54] sm:$0xf]
    %v906 = vld [vmem:[%s3 + $0x58] sm:$0xf]
    %v907 = vld [vmem:[%s3 + $0x5c] sm:$0xf]
    %v908 = vld [vmem:[%s3 + $0x60] sm:$0xf]
    %v909 = vld [vmem:[%s3 + $0x64] sm:$0xf]
    %v910 = vld [vmem:[%s3 + $0x68] sm:$0xf]
    %v911 = vld [vmem:[%s3 + $0x6c] sm:$0xf]
    %v912 = vld [vmem:[%s3 + $0x70] sm:$0xf]
    %v913 = vld [vmem:[%s3 + $0x74] sm:$0xf]
    %v914 = vld [vmem:[%s3 + $0x78] sm:$0xf]
    %v915 = vld [vmem:[%s3 + $0x7c] sm:$0xf]
    %v916 = vld [vmem:[%s4 + $0x4] ss:$0 sm:$0xff]
    %v917 = vpack.c.bf16 %v882, %v882
    %v918 = vpack.c.bf16 %v883, %v883
    %v951 = vunpack.c.l.b16 %v884
    %v952 = vunpack.c.l.b16 %v885
    %v953 = vunpack.c.l.b16 %v886
    %v954 = vunpack.c.l.b16 %v887
    %v955 = vunpack.c.l.b16 %v888
    %v956 = vunpack.c.l.b16 %v889
    %v957 = vunpack.c.l.b16 %v890
    %v958 = vunpack.c.l.b16 %v891
    %v959 = vunpack.c.l.b16 %v892
    %v960 = vunpack.c.l.b16 %v893
    %v961 = vunpack.c.l.b16 %v894
    %v962 = vunpack.c.l.b16 %v895
    %v963 = vunpack.c.l.b16 %v896
    %v964 = vunpack.c.l.b16 %v897
    %v965 = vunpack.c.l.b16 %v898
    %v966 = vunpack.c.l.b16 %v899
    %v967 = vunpack.c.l.b16 %v900
    %v968 = vunpack.c.l.b16 %v901
    %v969 = vunpack.c.l.b16 %v902
    %v970 = vunpack.c.l.b16 %v903
    %v971 = vunpack.c.l.b16 %v904
    %v972 = vunpack.c.l.b16 %v905
    %v973 = vunpack.c.l.b16 %v906
    %v974 = vunpack.c.l.b16 %v907
    %v975 = vunpack.c.l.b16 %v908
    %v976 = vunpack.c.l.b16 %v909
    %v977 = vunpack.c.l.b16 %v910
    %v978 = vunpack.c.l.b16 %v911
    %v979 = vunpack.c.l.b16 %v912
    %v980 = vunpack.c.l.b16 %v913
    %v981 = vunpack.c.l.b16 %v914
    %v982 = vunpack.c.l.b16 %v915
    %v983 = vpack.c.b16 %v952, %v951
    %v984 = vpack.c.b16 %v954, %v953
    %v985 = vpack.c.b16 %v956, %v955
    %v986 = vpack.c.b16 %v958, %v957
    %v987 = vpack.c.b16 %v960, %v959
    %v988 = vpack.c.b16 %v962, %v961
    %v989 = vpack.c.b16 %v964, %v963
    %v990 = vpack.c.b16 %v966, %v965
    %v991 = vpack.c.b16 %v968, %v967
    %v992 = vpack.c.b16 %v970, %v969
    %v993 = vpack.c.b16 %v972, %v971
    %v994 = vpack.c.b16 %v974, %v973
    %v995 = vpack.c.b16 %v976, %v975
    %v996 = vpack.c.b16 %v978, %v977
    %v997 = vpack.c.b16 %v980, %v979
    %v998 = vpack.c.b16 %v982, %v981
    %1015 = vmatprep.subr.bf16.mxu0 0
    %1016 = vmatpush1.bf16.msra.mxu0 %v990
    %1017 = vmatprep.subr.bf16.mxu0 0
    %1018 = vmatpush1.bf16.msra.mxu0 %v989
    %1019 = vmatprep.subr.bf16.mxu0 0
    %1020 = vmatpush1.bf16.msra.mxu0 %v988
    %1021 = vmatprep.subr.bf16.mxu0 0
    %1022 = vmatpush1.bf16.msra.mxu0 %v987
    %1023 = vmatprep.subr.bf16.mxu0 0
    %1024 = vmatpush1.bf16.msra.mxu0 %v986
    %1025 = vmatprep.subr.bf16.mxu0 0
    %1026 = vmatpush1.bf16.msra.mxu0 %v985
    %1027 = vmatprep.subr.bf16.mxu0 0
    %1028 = vmatpush1.bf16.msra.mxu0 %v984
    %1029 = vmatprep.subr.bf16.mxu0 0
    %1030 = vmatpush1.bf16.msra.mxu0 %v983
    %1031 = vmatprep.subr.bf16.mxu0 0
    %1032 = vmatpush2.bf16.msra.mxu0 %v998
    %1033 = vmatprep.subr.bf16.mxu0 0
    %1034 = vmatpush2.bf16.msra.mxu0 %v997
    %1035 = vmatprep.subr.bf16.mxu0 0
    %1036 = vmatpush2.bf16.msra.mxu0 %v996
    %1037 = vmatprep.subr.bf16.mxu0 0
    %1038 = vmatpush2.bf16.msra.mxu0 %v995
    %1039 = vmatprep.subr.bf16.mxu0 0
    %1040 = vmatpush2.bf16.msra.mxu0 %v994
    %1041 = vmatprep.subr.bf16.mxu0 0
    %1042 = vmatpush2.bf16.msra.mxu0 %v993
    %1043 = vmatprep.subr.bf16.mxu0 0
    %1044 = vmatpush2.bf16.msra.mxu0 %v992
    %1045 = vmatprep.subr.bf16.mxu0 0
    %1046 = vmatpush2.bf16.msra.mxu0 %v991
    %1047 = vmatprep.mubr.bf16.mxu0 %v918
    %1048 = vmatmul.mubr.bf16.gmra.mxu0 %v917
    %v1049 = vpop.f32.mrf.mxu0
    %v1050 = vadd.f32 %v916, %v1049
    %v1051 = vpop.f32.mrf.mxu0
    %v1052 = vpop.f32.mrf.mxu0
    %v1053 = vpop.f32.mrf.mxu0
    %1054 = vdwg.mxu0
    %vm1055 = vcmask 64512
    %1056 = vst.msk [vmem:[#allocation5] sm:$0xff] %vm1055, %v1050
    // Predicated region
    $region26: #{dqn_forward.1} parent=1 // pred_check
      _
    $region27: #{dqn_forward.1} parent=1 // pred_check_branch
      %1058 = sbr.rel (0) target = $region29
    $region28: #{dqn_forward.1} parent=1 // pred_region
      %s1060 = ssub.s32 128, 128
      %1061 = vsyncadd [#allocation4], %s1060
      %s1063 = sshll.u32 [#allocation5], 4
      %s1064 = int_to_ptr.vmem [resolvable:$true] %s1063
      %1066 = dma.vmem_to_hbm [thread:$0]  %s1064, 128, %s5, [#allocation4]
    $region29: #{dqn_forward.1} parent=1 // pred_fallthru
      _
    // Predicated region
    $region30: #{dqn_forward.1} parent=1 // pred_check
      _
    $region31: #{dqn_forward.1} parent=1 // pred_check_branch
      %1068 = sbr.rel (0) target = $region33
    $region32: #{dqn_forward.1} parent=1 // pred_region
      %1069 = dma.done [#allocation4], 128
    $region33: #{dqn_forward.1} parent=1 // pred_fallthru
      _
    %1070 = vsyncpa [#allocation3], 1
    %1071 = vsyncpa [#allocation4], 1

</llo_original>
